<compile_context>
chip_gen: v5e
topology: v5e:2x2
jax: 0.10.0
libtpu: 0.0.40
codegen_flags: <defaults>
</compile_context>

<pallas_src>
import jax
import jax.numpy as jnp
from jax import lax
from jax.experimental import pallas as pl
from jax.experimental.pallas import tpu as pltpu

# Problem sizes (small, consistent with the module's __init__ signature).
B = 2          # number of graphs in the batch
N = 8          # nodes per graph (fixed-size dense graphs)
F_IN = 16      # in_feats
UNITS = 8      # units
HEADS = 4      # num_heads
G_IN = 8       # in_feats_glob
HU = UNITS * HEADS     # 32
BN = B * N             # 16
HBN = HEADS * BN       # 64  (head, node) stacked rows

# ---- packed-operand lane layout (all lane offsets are multiples of 8) ----
# data operand D: (HBN, D_LANES)
_XS, _NEG, _GF = 0, 16, 32
D_LANES = 40
# constant operand C: (HBN, C_LANES)
_WCAT, _REPH, _WLST, _MMSK, _SEL, _WF, _POOL, _BG, _BF = (
    0, 40, 48, 64, 96, 160, 168, 184, 216)
C_LANES = 224

# dot_general dimension numbers: contract the LAST dim of both operands (trans_b matmul).
_TRANS_B = (((1,), (1,)), ((), ()))


def _leaky(x, slope):
    return jnp.where(x >= 0, x, slope * x)


def gat_kernel(d_ref, c_ref, out_ref):
    """Single grid-less invocation: whole (tiny) batch processed at once in VMEM."""
    # ---- data (free static views of the single packed data buffer) ----
    xs = d_ref[:, _XS:_XS + F_IN]              # (HBN, F_IN)  head-tiled node features
    x = d_ref[0:BN, _XS:_XS + F_IN]            # (BN, F_IN)
    neg = d_ref[:, _NEG:_NEG + BN]             # (HBN, BN)    0 / -1e9 additive adjacency mask
    gf = d_ref[0:B, _GF:_GF + G_IN]            # (B, G_IN)    global features

    # ---- constants (free static views of the single packed constant buffer) ----
    wcat = c_ref[0:F_IN, _WCAT:_WCAT + HU + HEADS]   # [wg | wr]            (F_IN, HU+HEADS)
    reph = c_ref[:, _REPH:_REPH + HEADS]             # one-hot head per row (HBN, HEADS)
    wlst = c_ref[:, _WLST:_WLST + F_IN]              # wl[:,h] per row      (HBN, F_IN)
    mmsk = c_ref[:, _MMSK:_MMSK + HU]                # head-block lane mask (HBN, HU)
    sel = c_ref[0:BN, _SEL:_SEL + HBN]               # head-collapse select (BN, HBN)
    wf_g = c_ref[0:G_IN, _WF:_WF + UNITS]            # fc weight, glob part (G_IN, UNITS)
    wf_h = c_ref[G_IN:G_IN + HU, _WF:_WF + UNITS]    # fc weight, hmean part(HU, UNITS)
    pool = c_ref[0:B, _POOL:_POOL + BN]              # per-graph mean pool  (B, BN)
    bg = c_ref[0:1, _BG:_BG + HU]                    # GATConv bias         (1, HU)
    bf = c_ref[0:1, _BF:_BF + UNITS]                 # fc bias              (1, UNITS)

    # Fused projection: z (per node) and head-tiled er in a single MXU push.
    zs = jnp.dot(xs, wcat, preferred_element_type=jnp.float32)        # (HBN, HU+HEADS)
    z = zs[0:BN, 0:HU]                                                 # (BN, HU)
    # er_col[h*BN+dst, 0] = er[dst, h]  (pick this row-block's head column, tiny XLU reduce)
    er_col = jnp.sum(zs[:, HU:HU + HEADS] * reph, axis=-1, keepdims=True)   # (HBN, 1)

    # el broadcast rows: el_rows[h*BN+dst, src] = el[src, h]
    # (trans_b matmul against the wrapper-folded per-row wl weight -> no transpose op).
    el_rows = lax.dot_general(wlst, x, _TRANS_B,
                              preferred_element_type=jnp.float32)      # (HBN, BN)

    # One stacked softmax over src for ALL (head, dst) rows.
    e = _leaky(el_rows + er_col, 0.2) + neg                            # (HBN, BN)
    maskf = (neg >= 0.0).astype(jnp.float32)   # guards rows with zero valid in-edges
    m = jnp.max(e, axis=-1, keepdims=True)
    p = jnp.exp(e - m) * maskf
    s = jnp.sum(p, axis=-1, keepdims=True)
    a = p * pl.reciprocal(jnp.maximum(s, 1e-9), approx=True)           # EUP reciprocal

    # Single aggregation matmul + single head-collapse matmul (was 4 matmuls + adds).
    agg = jnp.dot(a, z, preferred_element_type=jnp.float32)            # (HBN, HU)
    rst = jnp.dot(sel, agg * mmsk, preferred_element_type=jnp.float32)  # (BN, HU)
    h = _leaky(rst + bg, 0.01)
    out_ref[0:BN, :] = h.astype(out_ref.dtype)

    # dgl.mean_nodes for both graphs at once (MXU) + final Linear with split weight.
    hmean = jnp.dot(pool, h, preferred_element_type=jnp.float32)       # (B, HU)
    hg = (jnp.dot(gf, wf_g, preferred_element_type=jnp.float32)
          + jnp.dot(hmean, wf_h, preferred_element_type=jnp.float32)
          + bf)                                                        # (B, UNITS)
    out_ref[BN:BN + B, 0:UNITS] = _leaky(hg, 0.01).astype(out_ref.dtype)


def gat_module_forward(feat, adj, feat_glob, params):
    wg, al, ar, bg, wf, bf = params

    feat2d = feat.reshape(BN, F_IN)
    gfeat2d = feat_glob.reshape(B, G_IN)

    # Block-diagonal adjacency (cross-graph entries stay masked => per-graph softmax),
    # converted to an additive mask and tiled over heads.
    adj_bd = jnp.zeros((BN, BN), jnp.float32)
    for b in range(B):
        adj_bd = adj_bd.at[b * N:(b + 1) * N, b * N:(b + 1) * N].set(adj[b])
    neg = jnp.where(adj_bd > 0.0, 0.0, -1e9).astype(jnp.float32)

    # ---- single packed DATA operand (1 input DMA) ----
    d = jnp.zeros((HBN, D_LANES), jnp.float32)
    d = d.at[:, _XS:_XS + F_IN].set(jnp.tile(feat2d, (HEADS, 1)))
    d = d.at[:, _NEG:_NEG + BN].set(jnp.tile(neg, (HEADS, 1)))
    d = d.at[0:B, _GF:_GF + G_IN].set(gfeat2d)

    # ---- folded parameters (in a real model these are precomputed once per checkpoint) ----
    eye_h = jnp.eye(HEADS, dtype=jnp.float32)
    al_bd = (al[:, :, None] * eye_h[:, None, :]).reshape(HU, HEADS)
    ar_bd = (ar[:, :, None] * eye_h[:, None, :]).reshape(HU, HEADS)
    wl = jnp.dot(wg, al_bd)                                  # (F_IN, HEADS)
    wr = jnp.dot(wg, ar_bd)                                  # (F_IN, HEADS)

    reph = jnp.repeat(eye_h, BN, axis=0)                                     # (HBN, HEADS)
    wlst = jnp.repeat(wl.T, BN, axis=0)                                      # (HBN, F_IN)
    mmsk = jnp.kron(eye_h, jnp.ones((BN, UNITS), jnp.float32))               # (HBN, HU)
    sel = jnp.tile(jnp.eye(BN, dtype=jnp.float32), (1, HEADS))               # (BN, HBN)
    pool = jnp.repeat(jnp.eye(B, dtype=jnp.float32), N, axis=1) / float(N)   # (B, BN)

    # ---- single packed CONSTANT operand (1 input DMA) ----
    c = jnp.zeros((HBN, C_LANES), jnp.float32)
    c = c.at[0:F_IN, _WCAT:_WCAT + HU].set(wg)
    c = c.at[0:F_IN, _WCAT + HU:_WCAT + HU + HEADS].set(wr)
    c = c.at[:, _REPH:_REPH + HEADS].set(reph)
    c = c.at[:, _WLST:_WLST + F_IN].set(wlst)
    c = c.at[:, _MMSK:_MMSK + HU].set(mmsk)
    c = c.at[0:BN, _SEL:_SEL + HBN].set(sel)
    c = c.at[0:G_IN + HU, _WF:_WF + UNITS].set(wf)
    c = c.at[0:B, _POOL:_POOL + BN].set(pool)
    c = c.at[0:1, _BG:_BG + HU].set(bg)
    c = c.at[0:1, _BF:_BF + UNITS].set(bf)

    flops = 2 * (HBN * F_IN * (HU + HEADS)      # fused projection
                 + HBN * F_IN * BN              # el broadcast rows
                 + HBN * BN * HU                # aggregation
                 + BN * HBN * HU                # head collapse
                 + B * BN * HU                  # mean pooling
                 + B * G_IN * UNITS + B * HU * UNITS)   # fc
    transcendentals = HBN * BN + HBN            # exp + approx reciprocal
    bytes_accessed = 4 * (HBN * D_LANES + HBN * C_LANES + (BN + B) * HU)

    out = pl.pallas_call(
        gat_kernel,
        out_shape=jax.ShapeDtypeStruct((BN + B, HU), jnp.float32),   # h rows 0:BN, hg rows BN:BN+B
        cost_estimate=pl.CostEstimate(flops=flops,
                                      transcendentals=transcendentals,
                                      bytes_accessed=bytes_accessed),
    )(d, c)

    h = out[0:BN, :].reshape(B, N, HU)
    hg = out[BN:BN + B, 0:UNITS].reshape(B, 1, UNITS)
    return h, hg


def reference_forward(feat, adj, feat_glob, params):
    """Pure-JAX reference with identical semantics, for validation."""
    wg, al, ar, bg, wf, bf = params
    z = jnp.einsum("bnf,fk->bnk", feat, wg).reshape(B, N, HEADS, UNITS)
    el = jnp.sum(z * al[None, None], axis=-1)                     # (B, N, H)
    er = jnp.sum(z * ar[None, None], axis=-1)                     # (B, N, H)
    e = _leaky(er[:, :, None, :] + el[:, None, :, :], 0.2)        # (B, dst, src, H)
    mask = adj[..., None] > 0
    e = jnp.where(mask, e, -1e9)
    m = jnp.max(e, axis=2, keepdims=True)
    p = jnp.where(mask, jnp.exp(e - m), 0.0)
    a = p / jnp.maximum(jnp.sum(p, axis=2, keepdims=True), 1e-9)
    rst = jnp.einsum("bijh,bjhu->bihu", a, z)                     # (B, N, H, U)
    h = _leaky(rst.reshape(B, N, HU) + bg, 0.01)
    hmean = jnp.mean(h, axis=1, keepdims=True)                    # (B, 1, HU)
    hg_in = jnp.concatenate([feat_glob, hmean], axis=-1)
    hg = _leaky(jnp.einsum("bik,ko->bio", hg_in, wf) + bf, 0.01)
    return h, hg


if __name__ == "__main__":
    key = jax.random.PRNGKey(0)
    k = jax.random.split(key, 9)

    # Deterministic synthetic parameters (GATConv + fc shapes from __init__).
    wg = 0.2 * jax.random.normal(k[0], (F_IN, HU), jnp.float32)          # GATConv.fc weight
    al = 0.2 * jax.random.normal(k[1], (HEADS, UNITS), jnp.float32)      # attn_l
    ar = 0.2 * jax.random.normal(k[2], (HEADS, UNITS), jnp.float32)      # attn_r
    bg = 0.1 * jax.random.normal(k[3], (1, HU), jnp.float32)             # GATConv bias
    wf = 0.2 * jax.random.normal(k[4], (G_IN + HU, UNITS), jnp.float32)  # fc weight
    bf = 0.1 * jax.random.normal(k[5], (1, UNITS), jnp.float32)          # fc bias
    params = (wg, al, ar, bg, wf, bf)

    # Inputs: node features, random adjacency with self-loops, global features.
    feat = jax.random.normal(k[6], (B, N, F_IN), jnp.float32)
    rand_adj = (jax.random.uniform(k[7], (B, N, N)) < 0.4).astype(jnp.float32)
    adj = jnp.clip(rand_adj + jnp.eye(N, dtype=jnp.float32)[None], 0.0, 1.0)
    feat_glob = jax.random.normal(k[8], (B, 1, G_IN), jnp.float32)

    fwd = jax.jit(gat_module_forward)
    h, hg = fwd(feat, adj, feat_glob, params)
    jax.block_until_ready((h, hg))

    h_ref, hg_ref = reference_forward(feat, adj, feat_glob, params)
    # The only approximate op is the EUP approximate reciprocal in the softmax
    # normalisation (pl.reciprocal(approx=True)); hence the slightly relaxed tolerance.
    assert jnp.allclose(h, h_ref, atol=5e-3, rtol=5e-3), "node features mismatch"
    assert jnp.allclose(hg, hg_ref, atol=5e-3, rtol=5e-3), "global features mismatch"

    # TODO(synk): GlobalAttentionPooling (use_gap=True branch) not implemented; the default
    # use_gap=False path (dgl.mean_nodes) is what this kernel reproduces.
    print("KERNEL_OK")
</pallas_src>

<mosaic_0001>
module attributes {stable_mosaic.version = 11 : i64} {
  func.func @gat_kernel(%arg0: memref<64x40xf32, #tpu.memory_space<vmem>>, %arg1: memref<64x224xf32, #tpu.memory_space<vmem>>, %arg2: memref<18x32xf32, #tpu.memory_space<vmem>>) attributes {dimension_semantics = [], scalar_prefetch = 0 : i64, scratch_operands = 0 : i64, tpu.core_type = #tpu.core_type<tc>} {
    %c0 = arith.constant 0 : index
    %c0_0 = arith.constant 0 : index
    %0 = vector.load %arg0[%c0, %c0_0] : memref<64x40xf32, #tpu.memory_space<vmem>>, vector<64x16xf32>
    %c0_1 = arith.constant 0 : index
    %c0_2 = arith.constant 0 : index
    %1 = vector.load %arg0[%c0_1, %c0_2] : memref<64x40xf32, #tpu.memory_space<vmem>>, vector<16x16xf32>
    %c0_3 = arith.constant 0 : index
    %c16 = arith.constant 16 : index
    %2 = vector.load %arg0[%c0_3, %c16] : memref<64x40xf32, #tpu.memory_space<vmem>>, vector<64x16xf32>
    %c0_4 = arith.constant 0 : index
    %c32 = arith.constant 32 : index
    %3 = vector.load %arg0[%c0_4, %c32] : memref<64x40xf32, #tpu.memory_space<vmem>>, vector<2x8xf32>
    %c0_5 = arith.constant 0 : index
    %c0_6 = arith.constant 0 : index
    %4 = vector.load %arg1[%c0_5, %c0_6] : memref<64x224xf32, #tpu.memory_space<vmem>>, vector<16x36xf32>
    %c0_7 = arith.constant 0 : index
    %c40 = arith.constant 40 : index
    %5 = vector.load %arg1[%c0_7, %c40] : memref<64x224xf32, #tpu.memory_space<vmem>>, vector<64x4xf32>
    %c0_8 = arith.constant 0 : index
    %c48 = arith.constant 48 : index
    %6 = vector.load %arg1[%c0_8, %c48] : memref<64x224xf32, #tpu.memory_space<vmem>>, vector<64x16xf32>
    %c0_9 = arith.constant 0 : index
    %c64 = arith.constant 64 : index
    %7 = vector.load %arg1[%c0_9, %c64] : memref<64x224xf32, #tpu.memory_space<vmem>>, vector<64x32xf32>
    %c0_10 = arith.constant 0 : index
    %c96 = arith.constant 96 : index
    %8 = vector.load %arg1[%c0_10, %c96] : memref<64x224xf32, #tpu.memory_space<vmem>>, vector<16x64xf32>
    %c0_11 = arith.constant 0 : index
    %c160 = arith.constant 160 : index
    %9 = vector.load %arg1[%c0_11, %c160] : memref<64x224xf32, #tpu.memory_space<vmem>>, vector<8x8xf32>
    %c8 = arith.constant 8 : index
    %c160_12 = arith.constant 160 : index
    %10 = vector.load %arg1[%c8, %c160_12] : memref<64x224xf32, #tpu.memory_space<vmem>>, vector<32x8xf32>
    %c0_13 = arith.constant 0 : index
    %c168 = arith.constant 168 : index
    %11 = vector.load %arg1[%c0_13, %c168] : memref<64x224xf32, #tpu.memory_space<vmem>>, vector<2x16xf32>
    %c0_14 = arith.constant 0 : index
    %c184 = arith.constant 184 : index
    %12 = vector.load %arg1[%c0_14, %c184] : memref<64x224xf32, #tpu.memory_space<vmem>>, vector<1x32xf32>
    %c0_15 = arith.constant 0 : index
    %c216 = arith.constant 216 : index
    %13 = vector.load %arg1[%c0_15, %c216] : memref<64x224xf32, #tpu.memory_space<vmem>>, vector<1x8xf32>
    %cst = arith.constant dense<0.000000e+00> : vector<64x36xf32>
    %14 = tpu.matmul %0, %4, %cst {dimension_numbers = #tpu.dot_dimension_numbers<[1], [0], [0], [1], [0, 0, 1, 1], [], []>} : vector<64x16xf32>, vector<16x36xf32>, vector<64x36xf32> -> vector<64x36xf32>
    %15 = vector.extract_strided_slice %14 {offsets = [0, 0], sizes = [16, 32], strides = [1, 1]} : vector<64x36xf32> to vector<16x32xf32>
    %16 = vector.extract_strided_slice %14 {offsets = [0, 32], sizes = [64, 4], strides = [1, 1]} : vector<64x36xf32> to vector<64x4xf32>
    %17 = arith.mulf %16, %5 : vector<64x4xf32>
    %cst_16 = arith.constant dense<0.000000e+00> : vector<64xf32>
    %18 = vector.multi_reduction <add>, %17, %cst_16 [1] : vector<64x4xf32> to vector<64xf32>
    %19 = vector.shape_cast %18 : vector<64xf32> to vector<64x1xf32>
    %cst_17 = arith.constant dense<0.000000e+00> : vector<64x16xf32>
    %20 = tpu.matmul %6, %1, %cst_17 {dimension_numbers = #tpu.dot_dimension_numbers<[1], [1], [0], [0], [0, 0, 1, 0], [], []>} : vector<64x16xf32>, vector<16x16xf32>, vector<64x16xf32> -> vector<64x16xf32>
    %21 = vector.broadcast %19 : vector<64x1xf32> to vector<64x16xf32>
    %22 = arith.addf %20, %21 : vector<64x16xf32>
    %cst_18 = arith.constant 0.000000e+00 : f32
    %23 = vector.broadcast %cst_18 : f32 to vector<64x16xf32>
    %24 = arith.cmpf oge, %22, %23 : vector<64x16xf32>
    %cst_19 = arith.constant 2.000000e-01 : f32
    %25 = vector.broadcast %cst_19 : f32 to vector<64x16xf32>
    %26 = arith.mulf %25, %22 : vector<64x16xf32>
    %27 = arith.select %24, %22, %26 : vector<64x16xi1>, vector<64x16xf32>
    %28 = arith.addf %27, %2 : vector<64x16xf32>
    %cst_20 = arith.constant 0.000000e+00 : f32
    %29 = vector.broadcast %cst_20 : f32 to vector<64x16xf32>
    %30 = arith.cmpf oge, %2, %29 : vector<64x16xf32>
    %31 = arith.extui %30 : vector<64x16xi1> to vector<64x16xi32>
    %32 = arith.sitofp %31 : vector<64x16xi32> to vector<64x16xf32>
    %cst_21 = arith.constant dense<0xFF800000> : vector<64xf32>
    %33 = vector.multi_reduction <maximumf>, %28, %cst_21 [1] : vector<64x16xf32> to vector<64xf32>
    %34 = vector.shape_cast %33 : vector<64xf32> to vector<64x1xf32>
    %35 = vector.broadcast %34 : vector<64x1xf32> to vector<64x16xf32>
    %36 = arith.subf %28, %35 : vector<64x16xf32>
    %37 = math.exp %36 : vector<64x16xf32>
    %38 = arith.mulf %37, %32 : vector<64x16xf32>
    %cst_22 = arith.constant dense<0.000000e+00> : vector<64xf32>
    %39 = vector.multi_reduction <add>, %38, %cst_22 [1] : vector<64x16xf32> to vector<64xf32>
    %40 = vector.shape_cast %39 : vector<64xf32> to vector<64x1xf32>
    %cst_23 = arith.constant 9.99999971E-10 : f32
    %41 = vector.broadcast %cst_23 : f32 to vector<64x1xf32>
    %42 = arith.maximumf %40, %41 : vector<64x1xf32>
    %43 = tpu.reciprocal %42 {approx = true} : vector<64x1xf32> -> vector<64x1xf32>
    %44 = vector.broadcast %43 : vector<64x1xf32> to vector<64x16xf32>
    %45 = arith.mulf %38, %44 : vector<64x16xf32>
    %cst_24 = arith.constant dense<0.000000e+00> : vector<64x32xf32>
    %46 = tpu.matmul %45, %15, %cst_24 {dimension_numbers = #tpu.dot_dimension_numbers<[1], [0], [0], [1], [0, 0, 1, 1], [], []>} : vector<64x16xf32>, vector<16x32xf32>, vector<64x32xf32> -> vector<64x32xf32>
    %47 = arith.mulf %46, %7 : vector<64x32xf32>
    %cst_25 = arith.constant dense<0.000000e+00> : vector<16x32xf32>
    %48 = tpu.matmul %8, %47, %cst_25 {dimension_numbers = #tpu.dot_dimension_numbers<[1], [0], [0], [1], [0, 0, 1, 1], [], []>} : vector<16x64xf32>, vector<64x32xf32>, vector<16x32xf32> -> vector<16x32xf32>
    %49 = vector.broadcast %12 : vector<1x32xf32> to vector<16x32xf32>
    %50 = arith.addf %48, %49 : vector<16x32xf32>
    %cst_26 = arith.constant 0.000000e+00 : f32
    %51 = vector.broadcast %cst_26 : f32 to vector<16x32xf32>
    %52 = arith.cmpf oge, %50, %51 : vector<16x32xf32>
    %cst_27 = arith.constant 0.00999999977 : f32
    %53 = vector.broadcast %cst_27 : f32 to vector<16x32xf32>
    %54 = arith.mulf %53, %50 : vector<16x32xf32>
    %55 = arith.select %52, %50, %54 : vector<16x32xi1>, vector<16x32xf32>
    %c0_28 = arith.constant 0 : index
    %c0_29 = arith.constant 0 : index
    %56 = vector.load %arg2[%c0_28, %c0_29] : memref<18x32xf32, #tpu.memory_space<vmem>>, vector<16x32xf32>
    tpu.vector_store %arg2[%c0_28, %c0_29], %55 {strides = array<i32>} : memref<18x32xf32, #tpu.memory_space<vmem>>, vector<16x32xf32>,
    %cst_30 = arith.constant dense<0.000000e+00> : vector<2x32xf32>
    %57 = tpu.matmul %11, %55, %cst_30 {dimension_numbers = #tpu.dot_dimension_numbers<[1], [0], [0], [1], [0, 0, 1, 1], [], []>} : vector<2x16xf32>, vector<16x32xf32>, vector<2x32xf32> -> vector<2x32xf32>
    %cst_31 = arith.constant dense<0.000000e+00> : vector<2x8xf32>
    %58 = tpu.matmul %3, %9, %cst_31 {dimension_numbers = #tpu.dot_dimension_numbers<[1], [0], [0], [1], [0, 0, 1, 1], [], []>} : vector<2x8xf32>, vector<8x8xf32>, vector<2x8xf32> -> vector<2x8xf32>
    %cst_32 = arith.constant dense<0.000000e+00> : vector<2x8xf32>
    %59 = tpu.matmul %57, %10, %cst_32 {dimension_numbers = #tpu.dot_dimension_numbers<[1], [0], [0], [1], [0, 0, 1, 1], [], []>} : vector<2x32xf32>, vector<32x8xf32>, vector<2x8xf32> -> vector<2x8xf32>
    %60 = arith.addf %58, %59 : vector<2x8xf32>
    %61 = vector.broadcast %13 : vector<1x8xf32> to vector<2x8xf32>
    %62 = arith.addf %60, %61 : vector<2x8xf32>
    %cst_33 = arith.constant 0.000000e+00 : f32
    %63 = vector.broadcast %cst_33 : f32 to vector<2x8xf32>
    %64 = arith.cmpf oge, %62, %63 : vector<2x8xf32>
    %cst_34 = arith.constant 0.00999999977 : f32
    %65 = vector.broadcast %cst_34 : f32 to vector<2x8xf32>
    %66 = arith.mulf %65, %62 : vector<2x8xf32>
    %67 = arith.select %64, %62, %66 : vector<2x8xi1>, vector<2x8xf32>
    %c16_35 = arith.constant 16 : index
    %c0_36 = arith.constant 0 : index
    %68 = vector.load %arg2[%c16_35, %c0_36] : memref<18x32xf32, #tpu.memory_space<vmem>>, vector<2x8xf32>
    tpu.vector_store %arg2[%c16_35, %c0_36], %67 {strides = array<i32>} : memref<18x32xf32, #tpu.memory_space<vmem>>, vector<2x8xf32>,
    return
  }
}

</mosaic_0001>

<llo_original>
// kernel: gat_module_forward.1
$region0: #{gat_module_forward.1}
  #allocation0 [shape = 'u32[]', space=smem, size = 0x4, offset = 0x4, fixed_abs, tag = 'smem constant byte address 0x4 - core index']
  #allocation1 [shape = 'u32[72,128]{1,0:T(1,128)}', space=vmem, size = 0x9000, scoped, tag = 'internal scratch']
  %s0 = inlined_call_operand.vmem [shape: f32[64,40], index: 0, kind: input, shape index: {}]
  %s1 = inlined_call_operand.vmem [shape: f32[64,224], index: 1, kind: input, shape index: {}]
  %s2 = inlined_call_operand.vmem [shape: f32[18,32], index: 2, kind: output, shape index: {}]
  %s3 = sld [smem:[#allocation0]]
  $region18: #{gat_module_forward.1} parent=0
    _
  %s5 = ssub.s32 1, %s3
  %s6 = scalar_select 0, %s5, %s3
  // Predicated region
  $region2: #{gat_module_forward.1} parent=0 // pred_check
    _
  $region3: #{gat_module_forward.1} parent=0 // pred_check_branch
    %8 = sbr.rel (0) target = $region5
  $region4: #{gat_module_forward.1} parent=0 // pred_region
    _
  $region5: #{gat_module_forward.1} parent=0 // pred_fallthru
    _
  // Predicated region
  $region6: #{gat_module_forward.1} parent=0 // pred_check
    _
  $region7: #{gat_module_forward.1} parent=0 // pred_check_branch
    %10 = sbr.rel (0) target = $region9
  $region8: #{gat_module_forward.1} parent=0 // pred_region
    _
  $region9: #{gat_module_forward.1} parent=0 // pred_fallthru
    _
  %v11 = vld [vmem:[%s0] sm:$0xff]
  %v12 = vld [vmem:[%s0 + $0x8] sm:$0xff]
  %v13 = vld [vmem:[%s0 + $0x10] sm:$0xff]
  %v14 = vld [vmem:[%s0 + $0x18] sm:$0xff]
  %v15 = vld [vmem:[%s0 + $0x20] sm:$0xff]
  %v16 = vld [vmem:[%s0 + $0x28] sm:$0xff]
  %v17 = vld [vmem:[%s0 + $0x30] sm:$0xff]
  %v18 = vld [vmem:[%s0 + $0x38] sm:$0xff]
  %v19 = vld [vmem:[%s0] sm:$0x3]
  %v20 = vld [vmem:[%s1] sm:$0xff]
  %v21 = vld [vmem:[%s1 + $0x10] sm:$0xff]
  %v22 = vld [vmem:[%s1 + $0x20] sm:$0xff]
  %v23 = vld [vmem:[%s1 + $0x30] sm:$0xff]
  %v24 = vld [vmem:[%s1 + $0x40] sm:$0xff]
  %v25 = vld [vmem:[%s1 + $0x50] sm:$0xff]
  %v26 = vld [vmem:[%s1 + $0x60] sm:$0xff]
  %v27 = vld [vmem:[%s1 + $0x70] sm:$0xff]
  %v28 = vld [vmem:[%s1 + $0x8] sm:$0xff]
  %v29 = vld [vmem:[%s1 + $0x18] sm:$0xff]
  %v30 = vld [vmem:[%s1 + $0x28] sm:$0xff]
  %v31 = vld [vmem:[%s1 + $0x38] sm:$0xff]
  %v32 = vld [vmem:[%s1 + $0x48] sm:$0xff]
  %v33 = vld [vmem:[%s1 + $0x8] sm:$0x3]
  %v34 = vld [vmem:[%s1 + $0x8] ss:$0 sm:$0xff]
  %vm35 = vcmask 130048
  %v37 = vsel %vm35, %v11, 0
  %v40 = vsel %vm35, %v12, 0
  %v43 = vsel %vm35, %v13, 0
  %v46 = vsel %vm35, %v14, 0
  %v49 = vsel %vm35, %v15, 0
  %v52 = vsel %vm35, %v16, 0
  %v55 = vsel %vm35, %v17, 0
  %v58 = vsel %vm35, %v18, 0
  %60 = vmatpush.msra.mxu0 0.0
  %61 = vmatpush.msra.mxu0 0.0
  %62 = vmatpush.msra.mxu0 0.0
  %63 = vmatpush.msra.mxu0 0.0
  %64 = vmatpush.msra.mxu0 0.0
  %65 = vmatpush.msra.mxu0 0.0
  %66 = vmatpush.msra.mxu0 0.0
  %67 = vmatpush.msra.mxu0 0.0
  %68 = vmatpush.msra.mxu0 0.0
  %69 = vmatpush.msra.mxu0 0.0
  %70 = vmatpush.msra.mxu0 0.0
  %71 = vmatpush.msra.mxu0 0.0
  %72 = vmatpush.msra.mxu0 0.0
  %73 = vmatpush.msra.mxu0 0.0
  %74 = vmatpush.msra.mxu0 %v21
  %75 = vmatpush.msra.mxu0 %v20
  %76 = vmatmul.f32.gmra.mxu0 %v37
  %v77 = vpop.f32.mrf.mxu0
  %v78 = vadd.f32 0.0, %v77
  %79 = vmatmul.f32.gmra.mxu0 %v40
  %v80 = vpop.f32.mrf.mxu0
  %v81 = vadd.f32 0.0, %v80
  %82 = vmatmul.f32.gmra.mxu0 %v43
  %v83 = vpop.f32.mrf.mxu0
  %v84 = vadd.f32 0.0, %v83
  %85 = vmatmul.f32.gmra.mxu0 %v46
  %v86 = vpop.f32.mrf.mxu0
  %v87 = vadd.f32 0.0, %v86
  %88 = vmatmul.f32.gmra.mxu0 %v49
  %v89 = vpop.f32.mrf.mxu0
  %v90 = vadd.f32 0.0, %v89
  %91 = vmatmul.f32.gmra.mxu0 %v52
  %v92 = vpop.f32.mrf.mxu0
  %v93 = vadd.f32 0.0, %v92
  %94 = vmatmul.f32.gmra.mxu0 %v55
  %v95 = vpop.f32.mrf.mxu0
  %v96 = vadd.f32 0.0, %v95
  %97 = vmatmul.f32.gmra.mxu0 %v58
  %v98 = vpop.f32.mrf.mxu0
  %v99 = vadd.f32 0.0, %v98
  %100 = vdwg.mxu0
  %109 = vrot.lane.b32.xlu0 %v20, 120
  %v110 = vpop.permute.xlu0 %109
  %111 = vrot.lane.b32.xlu0 %v21, 120
  %v112 = vpop.permute.xlu0 %111
  %113 = vrot.lane.b32.xlu0 %v22, 120
  %v114 = vpop.permute.xlu0 %113
  %115 = vrot.lane.b32.xlu0 %v23, 120
  %v116 = vpop.permute.xlu0 %115
  %117 = vrot.lane.b32.xlu0 %v24, 120
  %v118 = vpop.permute.xlu0 %117
  %119 = vrot.lane.b32.xlu0 %v25, 120
  %v120 = vpop.permute.xlu0 %119
  %121 = vrot.lane.b32.xlu0 %v26, 120
  %v122 = vpop.permute.xlu0 %121
  %123 = vrot.lane.b32.xlu0 %v27, 120
  %v124 = vpop.permute.xlu0 %123
  %v133 = vmul.f32 %v78, %v110
  %v134 = vmul.f32 %v81, %v112
  %v135 = vmul.f32 %v84, %v114
  %v136 = vmul.f32 %v87, %v116
  %v137 = vmul.f32 %v90, %v118
  %v138 = vmul.f32 %v93, %v120
  %v139 = vmul.f32 %v96, %v122
  %v140 = vmul.f32 %v99, %v124
  %149 = vrot.lane.b32.xlu0 %v133, 96
  %v150 = vpop.permute.xlu0 %149
  %151 = vrot.lane.b32.xlu0 %v134, 96
  %v152 = vpop.permute.xlu0 %151
  %153 = vrot.lane.b32.xlu0 %v135, 96
  %v154 = vpop.permute.xlu0 %153
  %155 = vrot.lane.b32.xlu0 %v136, 96
  %v156 = vpop.permute.xlu0 %155
  %157 = vrot.lane.b32.xlu0 %v137, 96
  %v158 = vpop.permute.xlu0 %157
  %159 = vrot.lane.b32.xlu0 %v138, 96
  %v160 = vpop.permute.xlu0 %159
  %161 = vrot.lane.b32.xlu0 %v139, 96
  %v162 = vpop.permute.xlu0 %161
  %163 = vrot.lane.b32.xlu0 %v140, 96
  %v164 = vpop.permute.xlu0 %163
  %vm173 = vcmask 31744
  %v174 = vsel %vm173, %v150, 0.0
  %175 = vadd.xlane.f32.xlu0 %v174
  %v176 = vpop.xlane.xlu0 %175
  %v177 = vsel %vm173, %v152, 0.0
  %178 = vadd.xlane.f32.xlu0 %v177
  %v179 = vpop.xlane.xlu0 %178
  %v180 = vsel %vm173, %v154, 0.0
  %181 = vadd.xlane.f32.xlu0 %v180
  %v182 = vpop.xlane.xlu0 %181
  %v183 = vsel %vm173, %v156, 0.0
  %184 = vadd.xlane.f32.xlu0 %v183
  %v185 = vpop.xlane.xlu0 %184
  %v186 = vsel %vm173, %v158, 0.0
  %187 = vadd.xlane.f32.xlu0 %v186
  %v188 = vpop.xlane.xlu0 %187
  %v189 = vsel %vm173, %v160, 0.0
  %190 = vadd.xlane.f32.xlu0 %v189
  %v191 = vpop.xlane.xlu0 %190
  %v192 = vsel %vm173, %v162, 0.0
  %193 = vadd.xlane.f32.xlu0 %v192
  %v194 = vpop.xlane.xlu0 %193
  %v195 = vsel %vm173, %v164, 0.0
  %196 = vadd.xlane.f32.xlu0 %v195
  %v197 = vpop.xlane.xlu0 %196
  %198 = vrot.lane.b32.xlu0 %v20, 80
  %v199 = vpop.permute.xlu0 %198
  %200 = vrot.lane.b32.xlu0 %v21, 80
  %v201 = vpop.permute.xlu0 %200
  %202 = vrot.lane.b32.xlu0 %v22, 80
  %v203 = vpop.permute.xlu0 %202
  %204 = vrot.lane.b32.xlu0 %v23, 80
  %v205 = vpop.permute.xlu0 %204
  %206 = vrot.lane.b32.xlu0 %v24, 80
  %v207 = vpop.permute.xlu0 %206
  %208 = vrot.lane.b32.xlu0 %v25, 80
  %v209 = vpop.permute.xlu0 %208
  %210 = vrot.lane.b32.xlu0 %v26, 80
  %v211 = vpop.permute.xlu0 %210
  %212 = vrot.lane.b32.xlu0 %v27, 80
  %v213 = vpop.permute.xlu0 %212
  %v214 = vsel %vm35, %v199, 0
  %v216 = vsel %vm35, %v201, 0
  %v218 = vsel %vm35, %v203, 0
  %v220 = vsel %vm35, %v205, 0
  %v222 = vsel %vm35, %v207, 0
  %v224 = vsel %vm35, %v209, 0
  %v226 = vsel %vm35, %v211, 0
  %v228 = vsel %vm35, %v213, 0
  %230 = vmatpush.xpose.msra.mxu0 0.0
  %231 = vmatpush.xpose.msra.mxu0 0.0
  %232 = vmatpush.xpose.msra.mxu0 0.0
  %233 = vmatpush.xpose.msra.mxu0 0.0
  %234 = vmatpush.xpose.msra.mxu0 0.0
  %235 = vmatpush.xpose.msra.mxu0 0.0
  %236 = vmatpush.xpose.msra.mxu0 0.0
  %237 = vmatpush.xpose.msra.mxu0 0.0
  %238 = vmatpush.xpose.msra.mxu0 0.0
  %239 = vmatpush.xpose.msra.mxu0 0.0
  %240 = vmatpush.xpose.msra.mxu0 0.0
  %241 = vmatpush.xpose.msra.mxu0 0.0
  %242 = vmatpush.xpose.msra.mxu0 0.0
  %243 = vmatpush.xpose.msra.mxu0 0.0
  %244 = vmatpush.xpose.msra.mxu0 %v40
  %245 = vmatpush.xpose.msra.mxu0 %v37
  %246 = vmatmul.f32.gmra.mxu0 %v214
  %v247 = vpop.f32.mrf.mxu0
  %v248 = vadd.f32 %v176, %v247
  %249 = vmatmul.f32.gmra.mxu0 %v216
  %v250 = vpop.f32.mrf.mxu0
  %v251 = vadd.f32 %v179, %v250
  %252 = vmatmul.f32.gmra.mxu0 %v218
  %v253 = vpop.f32.mrf.mxu0
  %v254 = vadd.f32 %v182, %v253
  %255 = vmatmul.f32.gmra.mxu0 %v220
  %v256 = vpop.f32.mrf.mxu0
  %v257 = vadd.f32 %v185, %v256
  %258 = vmatmul.f32.gmra.mxu0 %v222
  %v259 = vpop.f32.mrf.mxu0
  %v260 = vadd.f32 %v188, %v259
  %261 = vmatmul.f32.gmra.mxu0 %v224
  %v262 = vpop.f32.mrf.mxu0
  %v263 = vadd.f32 %v191, %v262
  %264 = vmatmul.f32.gmra.mxu0 %v226
  %v265 = vpop.f32.mrf.mxu0
  %v266 = vadd.f32 %v194, %v265
  %267 = vmatmul.f32.gmra.mxu0 %v228
  %v268 = vpop.f32.mrf.mxu0
  %v269 = vadd.f32 %v197, %v268
  %270 = vdwg.mxu0
  %vm271 = vcmp.ge.f32.partialorder %v248, 0.0
  %vm272 = vcmp.ge.f32.partialorder %v251, 0.0
  %vm273 = vcmp.ge.f32.partialorder %v254, 0.0
  %vm274 = vcmp.ge.f32.partialorder %v257, 0.0
  %vm275 = vcmp.ge.f32.partialorder %v260, 0.0
  %vm276 = vcmp.ge.f32.partialorder %v263, 0.0
  %vm277 = vcmp.ge.f32.partialorder %v266, 0.0
  %vm278 = vcmp.ge.f32.partialorder %v269, 0.0
  %v279 = vmul.f32 %v248, 0.2
  %v280 = vmul.f32 %v251, 0.2
  %v281 = vmul.f32 %v254, 0.2
  %v282 = vmul.f32 %v257, 0.2
  %v283 = vmul.f32 %v260, 0.2
  %v284 = vmul.f32 %v263, 0.2
  %v285 = vmul.f32 %v266, 0.2
  %v286 = vmul.f32 %v269, 0.2
  %v287 = vsel %vm271, %v248, %v279
  %v288 = vsel %vm272, %v251, %v280
  %v289 = vsel %vm273, %v254, %v281
  %v290 = vsel %vm274, %v257, %v282
  %v291 = vsel %vm275, %v260, %v283
  %v292 = vsel %vm276, %v263, %v284
  %v293 = vsel %vm277, %v266, %v285
  %v294 = vsel %vm278, %v269, %v286
  %295 = vrot.lane.b32.xlu0 %v11, 112
  %v296 = vpop.permute.xlu0 %295
  %297 = vrot.lane.b32.xlu0 %v12, 112
  %v298 = vpop.permute.xlu0 %297
  %299 = vrot.lane.b32.xlu0 %v13, 112
  %v300 = vpop.permute.xlu0 %299
  %301 = vrot.lane.b32.xlu0 %v14, 112
  %v302 = vpop.permute.xlu0 %301
  %303 = vrot.lane.b32.xlu0 %v15, 112
  %v304 = vpop.permute.xlu0 %303
  %305 = vrot.lane.b32.xlu0 %v16, 112
  %v306 = vpop.permute.xlu0 %305
  %307 = vrot.lane.b32.xlu0 %v17, 112
  %v308 = vpop.permute.xlu0 %307
  %309 = vrot.lane.b32.xlu0 %v18, 112
  %v310 = vpop.permute.xlu0 %309
  %v319 = vadd.f32 %v287, %v296
  %v320 = vadd.f32 %v288, %v298
  %v321 = vadd.f32 %v289, %v300
  %v322 = vadd.f32 %v290, %v302
  %v323 = vadd.f32 %v291, %v304
  %v324 = vadd.f32 %v292, %v306
  %v325 = vadd.f32 %v293, %v308
  %v326 = vadd.f32 %v294, %v310
  %vm327 = vcmp.ge.f32.partialorder %v11, 0.0
  %vm328 = vcmp.ge.f32.partialorder %v12, 0.0
  %vm329 = vcmp.ge.f32.partialorder %v13, 0.0
  %vm330 = vcmp.ge.f32.partialorder %v14, 0.0
  %vm331 = vcmp.ge.f32.partialorder %v15, 0.0
  %vm332 = vcmp.ge.f32.partialorder %v16, 0.0
  %vm333 = vcmp.ge.f32.partialorder %v17, 0.0
  %vm334 = vcmp.ge.f32.partialorder %v18, 0.0
  %v335 = vsel %vm327, 1, 0
  %v336 = vsel %vm328, 1, 0
  %v337 = vsel %vm329, 1, 0
  %v338 = vsel %vm330, 1, 0
  %v339 = vsel %vm331, 1, 0
  %v340 = vsel %vm332, 1, 0
  %v341 = vsel %vm333, 1, 0
  %v342 = vsel %vm334, 1, 0
  %v343 = vcvt.s32.f32 %v335
  %v344 = vcvt.s32.f32 %v336
  %v345 = vcvt.s32.f32 %v337
  %v346 = vcvt.s32.f32 %v338
  %v347 = vcvt.s32.f32 %v339
  %v348 = vcvt.s32.f32 %v340
  %v349 = vcvt.s32.f32 %v341
  %v350 = vcvt.s32.f32 %v342
  %v351 = vsel %vm35, %v319, -inf
  %352 = vmax.xlane.f32.xlu0 %v351
  %v353 = vpop.xlane.xlu0 %352
  %v354 = vsel %vm35, %v320, -inf
  %355 = vmax.xlane.f32.xlu0 %v354
  %v356 = vpop.xlane.xlu0 %355
  %v357 = vsel %vm35, %v321, -inf
  %358 = vmax.xlane.f32.xlu0 %v357
  %v359 = vpop.xlane.xlu0 %358
  %v360 = vsel %vm35, %v322, -inf
  %361 = vmax.xlane.f32.xlu0 %v360
  %v362 = vpop.xlane.xlu0 %361
  %v363 = vsel %vm35, %v323, -inf
  %364 = vmax.xlane.f32.xlu0 %v363
  %v365 = vpop.xlane.xlu0 %364
  %v366 = vsel %vm35, %v324, -inf
  %367 = vmax.xlane.f32.xlu0 %v366
  %v368 = vpop.xlane.xlu0 %367
  %v369 = vsel %vm35, %v325, -inf
  %370 = vmax.xlane.f32.xlu0 %v369
  %v371 = vpop.xlane.xlu0 %370
  %v372 = vsel %vm35, %v326, -inf
  %373 = vmax.xlane.f32.xlu0 %v372
  %v374 = vpop.xlane.xlu0 %373
  %v375 = vsub.f32 %v319, %v353
  %v376 = vsub.f32 %v320, %v356
  %v377 = vsub.f32 %v321, %v359
  %v378 = vsub.f32 %v322, %v362
  %v379 = vsub.f32 %v323, %v365
  %v380 = vsub.f32 %v324, %v368
  %v381 = vsub.f32 %v325, %v371
  %v382 = vsub.f32 %v326, %v374
  %v383 = vmul.f32 %v375, 1.442695
  %v384 = vpow.pop %v383
  %v385 = vmul.f32 %v376, 1.442695
  %v386 = vpow.pop %v385
  %v387 = vmul.f32 %v377, 1.442695
  %v388 = vpow.pop %v387
  %v389 = vmul.f32 %v378, 1.442695
  %v390 = vpow.pop %v389
  %v391 = vmul.f32 %v379, 1.442695
  %v392 = vpow.pop %v391
  %v393 = vmul.f32 %v380, 1.442695
  %v394 = vpow.pop %v393
  %v395 = vmul.f32 %v381, 1.442695
  %v396 = vpow.pop %v395
  %v397 = vmul.f32 %v382, 1.442695
  %v398 = vpow.pop %v397
  %407 = vrot.lane.b32.xlu0 %v343, 112
  %v408 = vpop.permute.xlu0 %407
  %409 = vrot.lane.b32.xlu0 %v344, 112
  %v410 = vpop.permute.xlu0 %409
  %411 = vrot.lane.b32.xlu0 %v345, 112
  %v412 = vpop.permute.xlu0 %411
  %413 = vrot.lane.b32.xlu0 %v346, 112
  %v414 = vpop.permute.xlu0 %413
  %415 = vrot.lane.b32.xlu0 %v347, 112
  %v416 = vpop.permute.xlu0 %415
  %417 = vrot.lane.b32.xlu0 %v348, 112
  %v418 = vpop.permute.xlu0 %417
  %419 = vrot.lane.b32.xlu0 %v349, 112
  %v420 = vpop.permute.xlu0 %419
  %421 = vrot.lane.b32.xlu0 %v350, 112
  %v422 = vpop.permute.xlu0 %421
  %v431 = vmul.f32 %v384, %v408
  %v432 = vmul.f32 %v386, %v410
  %v433 = vmul.f32 %v388, %v412
  %v434 = vmul.f32 %v390, %v414
  %v435 = vmul.f32 %v392, %v416
  %v436 = vmul.f32 %v394, %v418
  %v437 = vmul.f32 %v396, %v420
  %v438 = vmul.f32 %v398, %v422
  %v439 = vsel %vm35, %v431, 0.0
  %440 = vadd.xlane.f32.xlu0 %v439
  %v441 = vpop.xlane.xlu0 %440
  %v442 = vsel %vm35, %v432, 0.0
  %443 = vadd.xlane.f32.xlu0 %v442
  %v444 = vpop.xlane.xlu0 %443
  %v445 = vsel %vm35, %v433, 0.0
  %446 = vadd.xlane.f32.xlu0 %v445
  %v447 = vpop.xlane.xlu0 %446
  %v448 = vsel %vm35, %v434, 0.0
  %449 = vadd.xlane.f32.xlu0 %v448
  %v450 = vpop.xlane.xlu0 %449
  %v451 = vsel %vm35, %v435, 0.0
  %452 = vadd.xlane.f32.xlu0 %v451
  %v453 = vpop.xlane.xlu0 %452
  %v454 = vsel %vm35, %v436, 0.0
  %455 = vadd.xlane.f32.xlu0 %v454
  %v456 = vpop.xlane.xlu0 %455
  %v457 = vsel %vm35, %v437, 0.0
  %458 = vadd.xlane.f32.xlu0 %v457
  %v459 = vpop.xlane.xlu0 %458
  %v460 = vsel %vm35, %v438, 0.0
  %461 = vadd.xlane.f32.xlu0 %v460
  %v462 = vpop.xlane.xlu0 %461
  %v463 = vmax.f32 %v441, 1e-09
  %v464 = vmax.f32 %v444, 1e-09
  %v465 = vmax.f32 %v447, 1e-09
  %v466 = vmax.f32 %v450, 1e-09
  %v467 = vmax.f32 %v453, 1e-09
  %v468 = vmax.f32 %v456, 1e-09
  %v469 = vmax.f32 %v459, 1e-09
  %v470 = vmax.f32 %v462, 1e-09
  %v471 = vrcp.pop %v463
  %v472 = vrcp.pop %v464
  %v473 = vrcp.pop %v465
  %v474 = vrcp.pop %v466
  %v475 = vrcp.pop %v467
  %v476 = vrcp.pop %v468
  %v477 = vrcp.pop %v469
  %v478 = vrcp.pop %v470
  %v479 = vmul.f32 %v431, %v471
  %v480 = vmul.f32 %v432, %v472
  %v481 = vmul.f32 %v433, %v473
  %v482 = vmul.f32 %v434, %v474
  %v483 = vmul.f32 %v435, %v475
  %v484 = vmul.f32 %v436, %v476
  %v485 = vmul.f32 %v437, %v477
  %v486 = vmul.f32 %v438, %v478
  %v488 = vsel %vm35, %v479, 0
  %v491 = vsel %vm35, %v480, 0
  %v494 = vsel %vm35, %v481, 0
  %v497 = vsel %vm35, %v482, 0
  %v500 = vsel %vm35, %v483, 0
  %v503 = vsel %vm35, %v484, 0
  %v506 = vsel %vm35, %v485, 0
  %v509 = vsel %vm35, %v486, 0
  %511 = vmatpush.msra.mxu0 0.0
  %512 = vmatpush.msra.mxu0 0.0
  %513 = vmatpush.msra.mxu0 0.0
  %514 = vmatpush.msra.mxu0 0.0
  %515 = vmatpush.msra.mxu0 0.0
  %516 = vmatpush.msra.mxu0 0.0
  %517 = vmatpush.msra.mxu0 0.0
  %518 = vmatpush.msra.mxu0 0.0
  %519 = vmatpush.msra.mxu0 0.0
  %520 = vmatpush.msra.mxu0 0.0
  %521 = vmatpush.msra.mxu0 0.0
  %522 = vmatpush.msra.mxu0 0.0
  %523 = vmatpush.msra.mxu0 0.0
  %524 = vmatpush.msra.mxu0 0.0
  %525 = vmatpush.msra.mxu0 %v81
  %526 = vmatpush.msra.mxu0 %v78
  %527 = vmatmul.f32.gmra.mxu0 %v488
  %v528 = vpop.f32.mrf.mxu0
  %v529 = vadd.f32 0.0, %v528
  %530 = vmatmul.f32.gmra.mxu0 %v491
  %v531 = vpop.f32.mrf.mxu0
  %v532 = vadd.f32 0.0, %v531
  %533 = vmatmul.f32.gmra.mxu0 %v494
  %v534 = vpop.f32.mrf.mxu0
  %v535 = vadd.f32 0.0, %v534
  %536 = vmatmul.f32.gmra.mxu0 %v497
  %v537 = vpop.f32.mrf.mxu0
  %v538 = vadd.f32 0.0, %v537
  %539 = vmatmul.f32.gmra.mxu0 %v500
  %v540 = vpop.f32.mrf.mxu0
  %v541 = vadd.f32 0.0, %v540
  %542 = vmatmul.f32.gmra.mxu0 %v503
  %v543 = vpop.f32.mrf.mxu0
  %v544 = vadd.f32 0.0, %v543
  %545 = vmatmul.f32.gmra.mxu0 %v506
  %v546 = vpop.f32.mrf.mxu0
  %v547 = vadd.f32 0.0, %v546
  %548 = vmatmul.f32.gmra.mxu0 %v509
  %v549 = vpop.f32.mrf.mxu0
  %v550 = vadd.f32 0.0, %v549
  %551 = vdwg.mxu0
  %552 = vrot.lane.b32.xlu0 %v20, 64
  %v553 = vpop.permute.xlu0 %552
  %554 = vrot.lane.b32.xlu0 %v21, 64
  %v555 = vpop.permute.xlu0 %554
  %556 = vrot.lane.b32.xlu0 %v22, 64
  %v557 = vpop.permute.xlu0 %556
  %558 = vrot.lane.b32.xlu0 %v23, 64
  %v559 = vpop.permute.xlu0 %558
  %560 = vrot.lane.b32.xlu0 %v24, 64
  %v561 = vpop.permute.xlu0 %560
  %562 = vrot.lane.b32.xlu0 %v25, 64
  %v563 = vpop.permute.xlu0 %562
  %564 = vrot.lane.b32.xlu0 %v26, 64
  %v565 = vpop.permute.xlu0 %564
  %566 = vrot.lane.b32.xlu0 %v27, 64
  %v567 = vpop.permute.xlu0 %566
  %v576 = vmul.f32 %v529, %v553
  %v577 = vmul.f32 %v532, %v555
  %v578 = vmul.f32 %v535, %v557
  %v579 = vmul.f32 %v538, %v559
  %v580 = vmul.f32 %v541, %v561
  %v581 = vmul.f32 %v544, %v563
  %v582 = vmul.f32 %v547, %v565
  %v583 = vmul.f32 %v550, %v567
  %586 = vrot.lane.b32.xlu0 %v20, 32
  %v587 = vpop.permute.xlu0 %586
  %588 = vrot.lane.b32.xlu0 %v28, 32
  %v589 = vpop.permute.xlu0 %588
  %590 = vrot.lane.b32.xlu0 %v21, 32
  %v591 = vpop.permute.xlu0 %590
  %592 = vrot.lane.b32.xlu0 %v29, 32
  %v593 = vpop.permute.xlu0 %592
  %vm594 = vcmask 261120
  %v595 = vsel %vm594, %v587, %v589
  %v596 = vsel %vm594, %v591, %v593
  %598 = vrot.lane.b32.xlu0 %v34, 72
  %v599 = vpop.permute.xlu0 %598
  %vm601 = vcmask 523264
  %v602 = vsel %vm601, %v595, 0
  %v604 = vsel %vm601, %v596, 0
  %606 = vmatpush.msra.mxu0 0.0
  %607 = vmatpush.msra.mxu0 0.0
  %608 = vmatpush.msra.mxu0 0.0
  %609 = vmatpush.msra.mxu0 0.0
  %610 = vmatpush.msra.mxu0 0.0
  %611 = vmatpush.msra.mxu0 0.0
  %612 = vmatpush.msra.mxu0 0.0
  %613 = vmatpush.msra.mxu0 0.0
  %614 = vmatpush.msra.mxu0 %v583
  %615 = vmatpush.msra.mxu0 %v582
  %616 = vmatpush.msra.mxu0 %v581
  %617 = vmatpush.msra.mxu0 %v580
  %618 = vmatpush.msra.mxu0 %v579
  %619 = vmatpush.msra.mxu0 %v578
  %620 = vmatpush.msra.mxu0 %v577
  %621 = vmatpush.msra.mxu0 %v576
  %622 = vmatmul.f32.gmra.mxu0 %v602
  %v623 = vpop.f32.mrf.mxu0
  %v624 = vadd.f32 %v599, %v623
  %625 = vmatmul.f32.gmra.mxu0 %v604
  %v626 = vpop.f32.mrf.mxu0
  %v627 = vadd.f32 %v599, %v626
  %628 = vdwg.mxu0
  %vm629 = vcmp.ge.f32.partialorder %v624, 0.0
  %vm630 = vcmp.ge.f32.partialorder %v627, 0.0
  %v631 = vmul.f32 %v624, 0.01
  %v632 = vmul.f32 %v627, 0.01
  %v633 = vsel %vm629, %v624, %v631
  %v634 = vsel %vm630, %v627, %v632
  %635 = vst.msk [vmem:[%s2] sm:$0xff] %vm594, %v633
  %636 = vst.msk [vmem:[%s2 + $0x8] sm:$0xff] %vm594, %v634
  %638 = vrot.lane.b32.xlu0 %v33, 88
  %v639 = vpop.permute.xlu0 %638
  %v640 = vsel %vm35, %v639, 0
  %642 = vmatpush.msra.mxu0 0.0
  %643 = vmatpush.msra.mxu0 0.0
  %644 = vmatpush.msra.mxu0 0.0
  %645 = vmatpush.msra.mxu0 0.0
  %646 = vmatpush.msra.mxu0 0.0
  %647 = vmatpush.msra.mxu0 0.0
  %648 = vmatpush.msra.mxu0 0.0
  %649 = vmatpush.msra.mxu0 0.0
  %650 = vmatpush.msra.mxu0 0.0
  %651 = vmatpush.msra.mxu0 0.0
  %652 = vmatpush.msra.mxu0 0.0
  %653 = vmatpush.msra.mxu0 0.0
  %654 = vmatpush.msra.mxu0 0.0
  %655 = vmatpush.msra.mxu0 0.0
  %656 = vmatpush.msra.mxu0 %v634
  %657 = vmatpush.msra.mxu0 %v633
  %658 = vmatmul.f32.gmra.mxu0 %v640
  %v659 = vpop.f32.mrf.mxu0
  %v660 = vadd.f32 0.0, %v659
  %661 = vdwg.mxu0
  %665 = vrot.lane.b32.xlu0 %v29, 96
  %v666 = vpop.permute.xlu0 %665
  %667 = vrot.lane.b32.xlu0 %v30, 96
  %v668 = vpop.permute.xlu0 %667
  %669 = vrot.lane.b32.xlu0 %v31, 96
  %v670 = vpop.permute.xlu0 %669
  %671 = vrot.lane.b32.xlu0 %v32, 96
  %v672 = vpop.permute.xlu0 %671
  %v678 = vsel %vm594, %v660, 0
  %680 = vmatpush.msra.mxu0 0.0
  %681 = vmatpush.msra.mxu0 0.0
  %682 = vmatpush.msra.mxu0 0.0
  %683 = vmatpush.msra.mxu0 0.0
  %684 = vmatpush.msra.mxu0 0.0
  %685 = vmatpush.msra.mxu0 0.0
  %686 = vmatpush.msra.mxu0 0.0
  %687 = vmatpush.msra.mxu0 0.0
  %688 = vmatpush.msra.mxu0 0.0
  %689 = vmatpush.msra.mxu0 0.0
  %690 = vmatpush.msra.mxu0 0.0
  %691 = vmatpush.msra.mxu0 0.0
  %692 = vmatpush.msra.mxu0 %v672
  %693 = vmatpush.msra.mxu0 %v670
  %694 = vmatpush.msra.mxu0 %v668
  %695 = vmatpush.msra.mxu0 %v666
  %696 = vmatmul.f32.gmra.mxu0 %v678
  %v697 = vpop.f32.mrf.mxu0
  %v698 = vadd.f32 0.0, %v697
  %699 = vdwg.mxu0
  %701 = vrot.lane.b32.xlu0 %v19, 96
  %v702 = vpop.permute.xlu0 %701
  %703 = vrot.lane.b32.xlu0 %v28, 96
  %v704 = vpop.permute.xlu0 %703
  %vm706 = vcmask 64512
  %v707 = vsel %vm706, %v702, 0
  %709 = vmatpush.msra.mxu0 0.0
  %710 = vmatpush.msra.mxu0 0.0
  %711 = vmatpush.msra.mxu0 0.0
  %712 = vmatpush.msra.mxu0 0.0
  %713 = vmatpush.msra.mxu0 0.0
  %714 = vmatpush.msra.mxu0 0.0
  %715 = vmatpush.msra.mxu0 0.0
  %716 = vmatpush.msra.mxu0 0.0
  %717 = vmatpush.msra.mxu0 0.0
  %718 = vmatpush.msra.mxu0 0.0
  %719 = vmatpush.msra.mxu0 0.0
  %720 = vmatpush.msra.mxu0 0.0
  %721 = vmatpush.msra.mxu0 0.0
  %722 = vmatpush.msra.mxu0 0.0
  %723 = vmatpush.msra.mxu0 0.0
  %724 = vmatpush.msra.mxu0 %v704
  %725 = vmatmul.f32.gmra.mxu0 %v707
  %v726 = vpop.f32.mrf.mxu0
  %v727 = vadd.f32 %v698, %v726
  %728 = vdwg.mxu0
  %729 = vrot.lane.b32.xlu0 %v34, 40
  %v730 = vpop.permute.xlu0 %729
  %v732 = vadd.f32 %v727, %v730
  %vm733 = vcmp.ge.f32.partialorder %v732, 0.0
  %v734 = vmul.f32 %v732, 0.01
  %v735 = vsel %vm733, %v732, %v734
  %vm736 = vcmask 58368
  %737 = vst.msk [vmem:[%s2 + $0x10] sm:$0x3] %vm736, %v735
  // Predicated region
  $region10: #{gat_module_forward.1} parent=0 // pred_check
    _
  $region11: #{gat_module_forward.1} parent=0 // pred_check_branch
    %739 = sbr.rel (0) target = $region13
  $region12: #{gat_module_forward.1} parent=0 // pred_region
    _
  $region13: #{gat_module_forward.1} parent=0 // pred_fallthru
    _
  // Predicated region
  $region14: #{gat_module_forward.1} parent=0 // pred_check
    _
  $region15: #{gat_module_forward.1} parent=0 // pred_check_branch
    %741 = sbr.rel (0) target = $region17
  $region16: #{gat_module_forward.1} parent=0 // pred_region
    _
  $region17: #{gat_module_forward.1} parent=0 // pred_fallthru
    _

</llo_original>
